<compile_context>
chip_gen: v5e
topology: v5e:2x2
jax: 0.10.0
libtpu: 0.0.40
codegen_flags: <defaults>
</compile_context>

<pallas_src>
import jax
import jax.numpy as jnp
from jax.experimental import pallas as pl
from jax.experimental.pallas import tpu as pltpu

OBS = 16                 # observation dim
HIDDEN = 32              # hidden width of both tanh layers
ACTIONS = 8              # categorical action space size
HIDDEN_PAD = 128         # hidden width padded to the lane width
HEAD_WIDTH_FULL = 128    # fused head with feature pass-through (bf16 output)
HEAD_WIDTH_SMALL = 16    # compact head [value | logits | pad]   (f32 output)
SUBLANE = 8
BIG_TILE_B = 2048        # batch-tile cap; sweep 2048-4096 per generation

# Column layout of the fused head outputs.
_VAL_OFF = 0
_PI_OFF = 1
_FEAT_OFF = 1 + ACTIONS


def _ff_policy_kernel(x_ref, w1_ref, b1_ref, w2_ref, b2_ref,
                      wh_ref, bh_ref, out_ref):
    """Fused MLP policy forward.

    out[:, 0]            = value
    out[:, 1:1+A]        = action logits
    out[:, 1+A:1+A+H]    = features (only in the full 128-wide head)

    Weights are bf16 (MXU-native on v6e/v7x); activations are cast to bf16 at
    the matmul inputs while accumulation, bias add and tanh stay in f32.
    """
    x = x_ref[...].astype(w1_ref.dtype)
    h1 = jnp.tanh(
        jnp.dot(x, w1_ref[...], preferred_element_type=jnp.float32)
        + b1_ref[...])
    h2 = jnp.tanh(
        jnp.dot(h1.astype(w2_ref.dtype), w2_ref[...],
                preferred_element_type=jnp.float32)
        + b2_ref[...])
    out = (jnp.dot(h2.astype(wh_ref.dtype), wh_ref[...],
                   preferred_element_type=jnp.float32)
           + bh_ref[...])
    out_ref[...] = out.astype(out_ref.dtype)


def _round_up(x, m):
    return pl.cdiv(x, m) * m


def _choose_tile_b(b):
    """Largest sublane-aligned tile <= BIG_TILE_B that still yields grid >= 2
    whenever the batch allows it (keeps both v7x TensorCores busy)."""
    b8 = _round_up(b, SUBLANE)
    if b8 <= SUBLANE:
        return SUBLANE
    half = _round_up((b8 + 1) // 2, SUBLANE)
    return min(BIG_TILE_B, half)


def prepare_packed_params(p):
    """One-time host-side packing: pad HIDDEN->128, fuse the heads, cast the
    matmul weights to bf16 (biases stay f32 for the f32 accumulate path)."""
    f32, bf16 = jnp.float32, jnp.bfloat16

    w1 = jnp.zeros((OBS, HIDDEN_PAD), f32).at[:, :HIDDEN].set(p["w1"])
    b1 = jnp.zeros((1, HIDDEN_PAD), f32).at[:, :HIDDEN].set(p["b1"])
    w2 = jnp.zeros((HIDDEN_PAD, HIDDEN_PAD), f32).at[:HIDDEN, :HIDDEN].set(p["w2"])
    b2 = jnp.zeros((1, HIDDEN_PAD), f32).at[:, :HIDDEN].set(p["b2"])

    # Full head: [value | logits | feat(identity) | zeros] -> bf16 output.
    whf = jnp.zeros((HIDDEN_PAD, HEAD_WIDTH_FULL), f32)
    whf = whf.at[:HIDDEN, _VAL_OFF:_VAL_OFF + 1].set(p["wv"])
    whf = whf.at[:HIDDEN, _PI_OFF:_PI_OFF + ACTIONS].set(p["wpi"])
    whf = whf.at[:HIDDEN, _FEAT_OFF:_FEAT_OFF + HIDDEN].set(
        jnp.eye(HIDDEN, dtype=f32))
    bhf = jnp.zeros((1, HEAD_WIDTH_FULL), f32)
    bhf = bhf.at[:, _VAL_OFF:_VAL_OFF + 1].set(p["bv"])
    bhf = bhf.at[:, _PI_OFF:_PI_OFF + ACTIONS].set(p["bpi"])

    # Compact head: [value | logits | zero pad] -> small f32 output for
    # act()/evaluate_actions() (8x less writeback, value kept in f32).
    whs = jnp.zeros((HIDDEN_PAD, HEAD_WIDTH_SMALL), f32)
    whs = whs.at[:HIDDEN, _VAL_OFF:_VAL_OFF + 1].set(p["wv"])
    whs = whs.at[:HIDDEN, _PI_OFF:_PI_OFF + ACTIONS].set(p["wpi"])
    bhs = jnp.zeros((1, HEAD_WIDTH_SMALL), f32)
    bhs = bhs.at[:, _VAL_OFF:_VAL_OFF + 1].set(p["bv"])
    bhs = bhs.at[:, _PI_OFF:_PI_OFF + ACTIONS].set(p["bpi"])

    return {"w1": w1.astype(bf16), "b1": b1,
            "w2": w2.astype(bf16), "b2": b2,
            "w_head_full": whf.astype(bf16), "b_head_full": bhf,
            "w_head_small": whs.astype(bf16), "b_head_small": bhs}


def ff_policy_forward(inputs, states, masks, packed, need_features=True):
    """Mirrors FFPolicy.forward(inputs, states, masks) -> (value, x, states),
    plus the action logits needed by act()/evaluate_actions().

    need_features=True  : full 128-wide bf16 head (features returned).
    need_features=False : compact 16-wide f32 head (feat is None) -- the fast
                          path used internally by act()/evaluate_actions().
    """
    b = inputs.shape[0]
    tile_b = _choose_tile_b(b)
    bp = _round_up(b, tile_b)
    grid = bp // tile_b

    x = inputs.astype(jnp.float32)
    if bp != b:
        # Only the ragged tail is padded; tile-multiple batches skip the copy.
        x = jnp.pad(x, ((0, bp - b), (0, 0)))

    if need_features:
        wh, bh = packed["w_head_full"], packed["b_head_full"]
        out_w, out_dt = HEAD_WIDTH_FULL, jnp.bfloat16
    else:
        wh, bh = packed["w_head_small"], packed["b_head_small"]
        out_w, out_dt = HEAD_WIDTH_SMALL, jnp.float32

    resident = lambda i: (0, 0)   # weights/biases stay VMEM-resident
    out = pl.pallas_call(
        _ff_policy_kernel,
        out_shape=jax.ShapeDtypeStruct((bp, out_w), out_dt),
        grid=(grid,),
        in_specs=[
            pl.BlockSpec((tile_b, OBS), lambda i: (i, 0)),
            pl.BlockSpec((OBS, HIDDEN_PAD), resident),
            pl.BlockSpec((1, HIDDEN_PAD), resident),
            pl.BlockSpec((HIDDEN_PAD, HIDDEN_PAD), resident),
            pl.BlockSpec((1, HIDDEN_PAD), resident),
            pl.BlockSpec((HIDDEN_PAD, out_w), resident),
            pl.BlockSpec((1, out_w), resident),
        ],
        out_specs=pl.BlockSpec((tile_b, out_w), lambda i: (i, 0)),
        compiler_params=pltpu.CompilerParams(
            dimension_semantics=("parallel",),
            vmem_limit_bytes=32 * 1024 * 1024,
        ),
    )(x, packed["w1"], packed["b1"], packed["w2"], packed["b2"], wh, bh)

    value = out[:b, _VAL_OFF:_VAL_OFF + 1].astype(jnp.float32)
    logits = out[:b, _PI_OFF:_PI_OFF + ACTIONS].astype(jnp.float32)
    feat = (out[:b, _FEAT_OFF:_FEAT_OFF + HIDDEN].astype(jnp.float32)
            if need_features else None)
    # masks are only used by recurrent policies; feed-forward passes states through.
    return value, feat, states, logits


def ff_policy_act(inputs, states, masks, packed, deterministic=False, key=None):
    """Mirrors FFPolicy.act -> (value, action, action_log_probs, states)."""
    value, _feat, states, logits = ff_policy_forward(
        inputs, states, masks, packed, need_features=False)
    log_probs = jax.nn.log_softmax(logits, axis=-1)
    if deterministic:
        action = jnp.argmax(logits, axis=-1, keepdims=True)
    else:
        if key is None:
            raise ValueError(
                "ff_policy_act: a PRNG key is required when deterministic=False")
        action = jax.random.categorical(key, logits, axis=-1)[:, None]
    action_log_probs = jnp.take_along_axis(log_probs, action, axis=-1)
    return value, action, action_log_probs, states


def ff_policy_evaluate_actions(inputs, states, masks, actions, packed):
    """Mirrors FFPolicy.evaluate_actions -> (value, log_probs, entropy, states)."""
    value, _feat, states, logits = ff_policy_forward(
        inputs, states, masks, packed, need_features=False)
    log_probs = jax.nn.log_softmax(logits, axis=-1)
    action_log_probs = jnp.take_along_axis(log_probs, actions, axis=-1)
    probs = jnp.exp(log_probs)
    dist_entropy = -(probs * log_probs).sum(-1).mean()
    return value, action_log_probs, dist_entropy, states


def init_params():
    key = jax.random.PRNGKey(0)
    ks = jax.random.split(key, 4)
    sc = 0.1
    return {
        "w1": sc * jax.random.normal(ks[0], (OBS, HIDDEN), jnp.float32),
        "b1": jnp.zeros((1, HIDDEN), jnp.float32),
        "w2": sc * jax.random.normal(ks[1], (HIDDEN, HIDDEN), jnp.float32),
        "b2": jnp.zeros((1, HIDDEN), jnp.float32),
        "wv": sc * jax.random.normal(ks[2], (HIDDEN, 1), jnp.float32),
        "bv": jnp.zeros((1, 1), jnp.float32),
        "wpi": sc * jax.random.normal(ks[3], (HIDDEN, ACTIONS), jnp.float32),
        "bpi": jnp.zeros((1, ACTIONS), jnp.float32),
    }


if __name__ == "__main__":
    params = init_params()
    packed = prepare_packed_params(params)

    key = jax.random.PRNGKey(0)
    batch = 2
    inputs = jax.random.normal(key, (batch, OBS), jnp.float32)
    states = jnp.zeros((batch, 1), jnp.float32)   # unused placeholder (FF policy)
    masks = jnp.ones((batch, 1), jnp.float32)

    # forward() with features (full 128-wide bf16 head).
    value, feat, states_out, logits = jax.block_until_ready(
        ff_policy_forward(inputs, states, masks, packed, need_features=True))
    # act() deterministic (compact 16-wide f32 head).
    value_a, action, action_log_probs, _ = jax.block_until_ready(
        ff_policy_act(inputs, states, masks, packed, deterministic=True))
    # compact head logits for the action consistency check.
    _, _, _, logits_small = jax.block_until_ready(
        ff_policy_forward(inputs, states, masks, packed, need_features=False))

    # Plain-JAX reference (unpadded f32 weights).
    h1 = jnp.tanh(inputs @ params["w1"] + params["b1"])
    h2 = jnp.tanh(h1 @ params["w2"] + params["b2"])
    v_ref = h2 @ params["wv"] + params["bv"]
    logits_ref = h2 @ params["wpi"] + params["bpi"]

    assert value.shape == (batch, 1) and value_a.shape == (batch, 1)
    assert feat.shape == (batch, HIDDEN)
    assert logits.shape == (batch, ACTIONS)
    assert action.shape == (batch, 1) and action_log_probs.shape == (batch, 1)
    # bf16 matmul operands (+ bf16 store for the full head) -> relaxed atol.
    assert jnp.allclose(value, v_ref, atol=3e-2)
    assert jnp.allclose(feat, h2, atol=3e-2)
    assert jnp.allclose(logits, logits_ref, atol=3e-2)
    assert jnp.allclose(value_a, v_ref, atol=2e-2)
    assert jnp.allclose(logits_small, logits_ref, atol=2e-2)
    assert jnp.all(action[:, 0] == jnp.argmax(logits_small, axis=-1))

    # Larger ragged batch: exercises grid >= 2 and the pad-and-slice path.
    big_b = 300
    big_inputs = jax.random.normal(jax.random.PRNGKey(1), (big_b, OBS), jnp.float32)
    big_states = jnp.zeros((big_b, 1), jnp.float32)
    big_masks = jnp.ones((big_b, 1), jnp.float32)
    bval, _, _, blog = jax.block_until_ready(
        ff_policy_forward(big_inputs, big_states, big_masks, packed,
                          need_features=False))
    bh1 = jnp.tanh(big_inputs @ params["w1"] + params["b1"])
    bh2 = jnp.tanh(bh1 @ params["w2"] + params["b2"])
    assert bval.shape == (big_b, 1) and blog.shape == (big_b, ACTIONS)
    assert jnp.allclose(bval, bh2 @ params["wv"] + params["bv"], atol=2e-2)
    assert jnp.allclose(blog, bh2 @ params["wpi"] + params["bpi"], atol=2e-2)

    print("KERNEL_OK")
</pallas_src>

<mosaic_0001>
module attributes {stable_mosaic.version = 11 : i64} {
  func.func @_ff_policy_kernel(%arg0: i32, %arg1: memref<8x16xf32, #tpu.memory_space<vmem>>, %arg2: memref<16x128xbf16, #tpu.memory_space<vmem>>, %arg3: memref<1x128xf32, #tpu.memory_space<vmem>>, %arg4: memref<128x128xbf16, #tpu.memory_space<vmem>>, %arg5: memref<1x128xf32, #tpu.memory_space<vmem>>, %arg6: memref<128x128xbf16, #tpu.memory_space<vmem>>, %arg7: memref<1x128xf32, #tpu.memory_space<vmem>>, %arg8: memref<8x128xbf16, #tpu.memory_space<vmem>>) attributes {dimension_semantics = [#tpu.dimension_semantics<parallel>], iteration_bounds = array<i64: 1>, scalar_prefetch = 0 : i64, scratch_operands = 0 : i64, tpu.core_type = #tpu.core_type<tc>, window_params = [{transform_indices = @transform_0, window_bounds = array<i64: 8, 16>}, {pipeline_mode = #tpu.pipeline_mode<synchronous>, transform_indices = @transform_1, window_bounds = array<i64: 16, 128>}, {pipeline_mode = #tpu.pipeline_mode<synchronous>, transform_indices = @transform_2, window_bounds = array<i64: 1, 128>}, {pipeline_mode = #tpu.pipeline_mode<synchronous>, transform_indices = @transform_3, window_bounds = array<i64: 128, 128>}, {pipeline_mode = #tpu.pipeline_mode<synchronous>, transform_indices = @transform_4, window_bounds = array<i64: 1, 128>}, {pipeline_mode = #tpu.pipeline_mode<synchronous>, transform_indices = @transform_5, window_bounds = array<i64: 128, 128>}, {pipeline_mode = #tpu.pipeline_mode<synchronous>, transform_indices = @transform_6, window_bounds = array<i64: 1, 128>}, {transform_indices = @transform_7, window_bounds = array<i64: 8, 128>}]} {
    %c0 = arith.constant 0 : index
    %c0_0 = arith.constant 0 : index
    %0 = vector.load %arg1[%c0, %c0_0] : memref<8x16xf32, #tpu.memory_space<vmem>>, vector<8x16xf32>
    %1 = arith.truncf %0 : vector<8x16xf32> to vector<8x16xbf16>
    %c0_1 = arith.constant 0 : index
    %c0_2 = arith.constant 0 : index
    %2 = vector.load %arg2[%c0_1, %c0_2] : memref<16x128xbf16, #tpu.memory_space<vmem>>, vector<16x128xbf16>
    %cst = arith.constant dense<0.000000e+00> : vector<8x128xf32>
    %3 = tpu.matmul %1, %2, %cst {dimension_numbers = #tpu.dot_dimension_numbers<[1], [0], [0], [1], [0, 0, 1, 1], [], []>} : vector<8x16xbf16>, vector<16x128xbf16>, vector<8x128xf32> -> vector<8x128xf32>
    %c0_3 = arith.constant 0 : index
    %c0_4 = arith.constant 0 : index
    %4 = vector.load %arg3[%c0_3, %c0_4] : memref<1x128xf32, #tpu.memory_space<vmem>>, vector<1x128xf32>
    %5 = vector.broadcast %4 : vector<1x128xf32> to vector<8x128xf32>
    %6 = arith.addf %3, %5 : vector<8x128xf32>
    %7 = math.tanh %6 : vector<8x128xf32>
    %8 = arith.truncf %7 : vector<8x128xf32> to vector<8x128xbf16>
    %c0_5 = arith.constant 0 : index
    %c0_6 = arith.constant 0 : index
    %9 = vector.load %arg4[%c0_5, %c0_6] : memref<128x128xbf16, #tpu.memory_space<vmem>>, vector<128x128xbf16>
    %cst_7 = arith.constant dense<0.000000e+00> : vector<8x128xf32>
    %10 = tpu.matmul %8, %9, %cst_7 {dimension_numbers = #tpu.dot_dimension_numbers<[1], [0], [0], [1], [0, 0, 1, 1], [], []>} : vector<8x128xbf16>, vector<128x128xbf16>, vector<8x128xf32> -> vector<8x128xf32>
    %c0_8 = arith.constant 0 : index
    %c0_9 = arith.constant 0 : index
    %11 = vector.load %arg5[%c0_8, %c0_9] : memref<1x128xf32, #tpu.memory_space<vmem>>, vector<1x128xf32>
    %12 = vector.broadcast %11 : vector<1x128xf32> to vector<8x128xf32>
    %13 = arith.addf %10, %12 : vector<8x128xf32>
    %14 = math.tanh %13 : vector<8x128xf32>
    %15 = arith.truncf %14 : vector<8x128xf32> to vector<8x128xbf16>
    %c0_10 = arith.constant 0 : index
    %c0_11 = arith.constant 0 : index
    %16 = vector.load %arg6[%c0_10, %c0_11] : memref<128x128xbf16, #tpu.memory_space<vmem>>, vector<128x128xbf16>
    %cst_12 = arith.constant dense<0.000000e+00> : vector<8x128xf32>
    %17 = tpu.matmul %15, %16, %cst_12 {dimension_numbers = #tpu.dot_dimension_numbers<[1], [0], [0], [1], [0, 0, 1, 1], [], []>} : vector<8x128xbf16>, vector<128x128xbf16>, vector<8x128xf32> -> vector<8x128xf32>
    %c0_13 = arith.constant 0 : index
    %c0_14 = arith.constant 0 : index
    %18 = vector.load %arg7[%c0_13, %c0_14] : memref<1x128xf32, #tpu.memory_space<vmem>>, vector<1x128xf32>
    %19 = vector.broadcast %18 : vector<1x128xf32> to vector<8x128xf32>
    %20 = arith.addf %17, %19 : vector<8x128xf32>
    %21 = arith.truncf %20 : vector<8x128xf32> to vector<8x128xbf16>
    %c0_15 = arith.constant 0 : index
    %c0_16 = arith.constant 0 : index
    %22 = vector.load %arg8[%c0_15, %c0_16] : memref<8x128xbf16, #tpu.memory_space<vmem>>, vector<8x128xbf16>
    tpu.vector_store %arg8[%c0_15, %c0_16], %21 {strides = array<i32>} : memref<8x128xbf16, #tpu.memory_space<vmem>>, vector<8x128xbf16>,
    return
  }
  func.func @transform_0(%arg0: i32) -> (i32, i32) {
    %c0_i32 = arith.constant 0 : i32
    %c0_i32_0 = arith.constant 0 : i32
    return %arg0, %c0_i32 : i32, i32
  }
  func.func @transform_1(%arg0: i32) -> (i32, i32) {
    %c0_i32 = arith.constant 0 : i32
    %c0_i32_0 = arith.constant 0 : i32
    %c0_i32_1 = arith.constant 0 : i32
    return %c0_i32, %c0_i32_0 : i32, i32
  }
  func.func @transform_2(%arg0: i32) -> (i32, i32) {
    %c0_i32 = arith.constant 0 : i32
    %c0_i32_0 = arith.constant 0 : i32
    %c0_i32_1 = arith.constant 0 : i32
    return %c0_i32, %c0_i32_0 : i32, i32
  }
  func.func @transform_3(%arg0: i32) -> (i32, i32) {
    %c0_i32 = arith.constant 0 : i32
    %c0_i32_0 = arith.constant 0 : i32
    %c0_i32_1 = arith.constant 0 : i32
    return %c0_i32, %c0_i32_0 : i32, i32
  }
  func.func @transform_4(%arg0: i32) -> (i32, i32) {
    %c0_i32 = arith.constant 0 : i32
    %c0_i32_0 = arith.constant 0 : i32
    %c0_i32_1 = arith.constant 0 : i32
    return %c0_i32, %c0_i32_0 : i32, i32
  }
  func.func @transform_5(%arg0: i32) -> (i32, i32) {
    %c0_i32 = arith.constant 0 : i32
    %c0_i32_0 = arith.constant 0 : i32
    %c0_i32_1 = arith.constant 0 : i32
    return %c0_i32, %c0_i32_0 : i32, i32
  }
  func.func @transform_6(%arg0: i32) -> (i32, i32) {
    %c0_i32 = arith.constant 0 : i32
    %c0_i32_0 = arith.constant 0 : i32
    %c0_i32_1 = arith.constant 0 : i32
    return %c0_i32, %c0_i32_0 : i32, i32
  }
  func.func @transform_7(%arg0: i32) -> (i32, i32) {
    %c0_i32 = arith.constant 0 : i32
    %c0_i32_0 = arith.constant 0 : i32
    return %arg0, %c0_i32 : i32, i32
  }
}

</mosaic_0001>

<llo_original>
// kernel: tpu_custom_call.1
$region0: #{tpu_custom_call.1}
  #allocation0 [shape = 'u32[]', space=smem, size = 0x4, offset = 0x4, fixed_abs, tag = 'smem constant byte address 0x4 - core index']
  #allocation1 [shape = 'u32[72,128]{1,0:T(1,128)}', space=vmem, size = 0x9000, scoped, tag = 'internal scratch']
  %s0 = inlined_call_operand.hbm [shape: f32[8,16], index: 0, kind: input, shape index: {}]
  %s1 = inlined_call_operand.hbm [shape: bf16[16,128], index: 1, kind: input, shape index: {}]
  %s2 = inlined_call_operand.vmem [shape: f32[1,128], index: 2, kind: input, shape index: {}]
  %s3 = inlined_call_operand.hbm [shape: bf16[128,128], index: 3, kind: input, shape index: {}]
  %s4 = inlined_call_operand.vmem [shape: f32[1,128], index: 4, kind: input, shape index: {}]
  %s5 = inlined_call_operand.hbm [shape: bf16[128,128], index: 5, kind: input, shape index: {}]
  %s6 = inlined_call_operand.vmem [shape: f32[1,128], index: 6, kind: input, shape index: {}]
  %s7 = inlined_call_operand.hbm [shape: bf16[8,128], index: 7, kind: output, shape index: {}]
  %s8 = sld [smem:[#allocation0]]
  $region54: #{tpu_custom_call.1} parent=0
    _
  %s10 = ssub.s32 1, %s8
  %s11 = scalar_select 0, %s10, %s8
  $region1: #{tpu_custom_call.1} parent=0
    #allocation2 [shape = 'u8[4096]{0}', space=vmem, size = 0x1000, scoped, tag = 'input window, operand 0, single buffered']
    #allocation3 [shape = 's32[1]{0}', space=sflag, size = 0x4, scoped, tag = 'scoped memory for tpu_custom_call.1']
    #allocation4 [shape = 's32[1]{0}', space=sflag, size = 0x4, scoped, tag = 'scoped memory for tpu_custom_call.1']
    #allocation5 [shape = 'u8[4096]{0}', space=vmem, size = 0x1000, scoped, tag = 'input window, operand 1, single buffered']
    #allocation6 [shape = 's32[1]{0}', space=sflag, size = 0x4, scoped, tag = 'scoped memory for tpu_custom_call.1']
    #allocation7 [shape = 'u8[32768]{0}', space=vmem, size = 0x8000, scoped, tag = 'input window, operand 3, single buffered']
    #allocation8 [shape = 'u8[32768]{0}', space=vmem, size = 0x8000, scoped, tag = 'input window, operand 5, single buffered']
    #allocation9 [shape = 's32[1]{0}', space=sflag, size = 0x4, scoped, tag = 'scoped memory for tpu_custom_call.1']
    #allocation10 [shape = 'u8[2048]{0}', space=vmem, size = 0x800, scoped, tag = 'output window, operand 0, single buffered']
    %12 = vsyncpa [#allocation3], 0
    %13 = vsyncpa [#allocation6], 0
    %14 = vsyncpa [#allocation9], 0
    %15 = vsyncpa [#allocation4], 0
    // Predicated region
    $region2: #{tpu_custom_call.1} parent=1 // pred_check
      _
    $region3: #{tpu_custom_call.1} parent=1 // pred_check_branch
      %17 = sbr.rel (0) target = $region5
    $region4: #{tpu_custom_call.1} parent=1 // pred_region
      %19 = vsyncadd [#allocation3], 0
      %s21 = sshll.u32 %s0, 4
      %s22 = int_to_ptr.hbm [resolvable:$true] %s21
      %s23 = sshll.u32 [#allocation2], 4
      %s24 = int_to_ptr.vmem [resolvable:$true] %s23
      %26 = dma.hbm_to_vmem [thread:$0]  %s22, 128, %s24, [#allocation3]
    $region5: #{tpu_custom_call.1} parent=1 // pred_fallthru
      _
    // Predicated region
    $region6: #{tpu_custom_call.1} parent=1 // pred_check
      _
    $region7: #{tpu_custom_call.1} parent=1 // pred_check_branch
      %28 = sbr.rel (0) target = $region9
    $region8: #{tpu_custom_call.1} parent=1 // pred_region
      %30 = vsyncadd [#allocation6], 0
      %s31 = sshll.u32 %s1, 4
      %s32 = int_to_ptr.hbm [resolvable:$true] %s31
      %s33 = sshll.u32 [#allocation5], 4
      %s34 = int_to_ptr.vmem [resolvable:$true] %s33
      %39 = dma.hbm_to_vmem [thread:$0]  %s32, 128, %s34, [#allocation6], 64, 64, 4
    $region9: #{tpu_custom_call.1} parent=1 // pred_fallthru
      _
    // Predicated region
    $region10: #{tpu_custom_call.1} parent=1 // pred_check
      _
    $region11: #{tpu_custom_call.1} parent=1 // pred_check_branch
      %41 = sbr.rel (0) target = $region13
    $region12: #{tpu_custom_call.1} parent=1 // pred_region
      _
    $region13: #{tpu_custom_call.1} parent=1 // pred_fallthru
      _
    // Predicated region
    $region14: #{tpu_custom_call.1} parent=1 // pred_check
      _
    $region15: #{tpu_custom_call.1} parent=1 // pred_check_branch
      %43 = sbr.rel (0) target = $region17
    $region16: #{tpu_custom_call.1} parent=1 // pred_region
      %45 = vsyncadd [#allocation6], 0
      %s46 = sshll.u32 %s3, 4
      %s47 = int_to_ptr.hbm [resolvable:$true] %s46
      %s48 = sshll.u32 [#allocation7], 4
      %s49 = int_to_ptr.vmem [resolvable:$true] %s48
      %54 = dma.hbm_to_vmem [thread:$0]  %s47, 1024, %s49, [#allocation6], 64, 64, 4
    $region17: #{tpu_custom_call.1} parent=1 // pred_fallthru
      _
    // Predicated region
    $region18: #{tpu_custom_call.1} parent=1 // pred_check
      _
    $region19: #{tpu_custom_call.1} parent=1 // pred_check_branch
      %56 = sbr.rel (0) target = $region21
    $region20: #{tpu_custom_call.1} parent=1 // pred_region
      _
    $region21: #{tpu_custom_call.1} parent=1 // pred_fallthru
      _
    // Predicated region
    $region22: #{tpu_custom_call.1} parent=1 // pred_check
      _
    $region23: #{tpu_custom_call.1} parent=1 // pred_check_branch
      %58 = sbr.rel (0) target = $region25
    $region24: #{tpu_custom_call.1} parent=1 // pred_region
      %60 = vsyncadd [#allocation9], 0
      %s61 = sshll.u32 %s5, 4
      %s62 = int_to_ptr.hbm [resolvable:$true] %s61
      %s63 = sshll.u32 [#allocation8], 4
      %s64 = int_to_ptr.vmem [resolvable:$true] %s63
      %69 = dma.hbm_to_vmem [thread:$0]  %s62, 1024, %s64, [#allocation9], 64, 64, 4
    $region25: #{tpu_custom_call.1} parent=1 // pred_fallthru
      _
    // Predicated region
    $region26: #{tpu_custom_call.1} parent=1 // pred_check
      _
    $region27: #{tpu_custom_call.1} parent=1 // pred_check_branch
      %71 = sbr.rel (0) target = $region29
    $region28: #{tpu_custom_call.1} parent=1 // pred_region
      _
    $region29: #{tpu_custom_call.1} parent=1 // pred_fallthru
      _
    // Predicated region
    $region30: #{tpu_custom_call.1} parent=1 // pred_check
      _
    $region31: #{tpu_custom_call.1} parent=1 // pred_check_branch
      %73 = sbr.rel (0) target = $region33
    $region32: #{tpu_custom_call.1} parent=1 // pred_region
      %75 = dma.done [#allocation3], 128
    $region33: #{tpu_custom_call.1} parent=1 // pred_fallthru
      _
    // Predicated region
    $region34: #{tpu_custom_call.1} parent=1 // pred_check
      _
    $region35: #{tpu_custom_call.1} parent=1 // pred_check_branch
      %77 = sbr.rel (0) target = $region37
    $region36: #{tpu_custom_call.1} parent=1 // pred_region
      %79 = dma.done [#allocation6], 128
    $region37: #{tpu_custom_call.1} parent=1 // pred_fallthru
      _
    // Predicated region
    $region38: #{tpu_custom_call.1} parent=1 // pred_check
      _
    $region39: #{tpu_custom_call.1} parent=1 // pred_check_branch
      %81 = sbr.rel (0) target = $region41
    $region40: #{tpu_custom_call.1} parent=1 // pred_region
      %83 = dma.done [#allocation6], 1024
    $region41: #{tpu_custom_call.1} parent=1 // pred_fallthru
      _
    // Predicated region
    $region42: #{tpu_custom_call.1} parent=1 // pred_check
      _
    $region43: #{tpu_custom_call.1} parent=1 // pred_check_branch
      %85 = sbr.rel (0) target = $region45
    $region44: #{tpu_custom_call.1} parent=1 // pred_region
      %87 = dma.done [#allocation9], 1024
    $region45: #{tpu_custom_call.1} parent=1 // pred_fallthru
      _
    %v89 = vld [vmem:[#allocation2] sm:$0xff]
    %v90 = vpack.c.bf16 %v89, %v89
    %v91 = vld [vmem:[#allocation5] sm:$0xf]
    %v92 = vld [vmem:[#allocation5 + $0x4] sm:$0xf]
    %v93 = vld [vmem:[%s2] sm:$0x1]
    %v95 = vperm.slane %v93, 0
    %v99 = vunpack.c.l.b16 %v91
    %v100 = vunpack.c.l.b16 %v92
    %v101 = vpack.c.b16 %v100, %v99
    %vm103 = vcmask 130048
    %v105 = vsel %vm103, %v90, 0
    %107 = vmatpush.bf16.msra.mxu0 0
    %108 = vmatpush.bf16.msra.mxu0 0
    %109 = vmatpush.bf16.msra.mxu0 0
    %110 = vmatpush.bf16.msra.mxu0 0
    %111 = vmatpush.bf16.msra.mxu0 0
    %112 = vmatpush.bf16.msra.mxu0 0
    %113 = vmatpush.bf16.msra.mxu0 0
    %114 = vmatpush.bf16.msra.mxu0 %v101
    %115 = vmatmul.bf16.gmra.mxu0 %v105
    %v116 = vpop.f32.mrf.mxu0
    %v117 = vadd.f32 %v95, %v116
    %v118 = vpop.f32.mrf.mxu0
    %119 = vdwg.mxu0
    %v120 = vtanh.pop %v117
    %v121 = vpack.c.bf16 %v120, %v120
    %v122 = vld [vmem:[#allocation7] sm:$0xf]
    %v123 = vld [vmem:[#allocation7 + $0x4] sm:$0xf]
    %v124 = vld [vmem:[#allocation7 + $0x8] sm:$0xf]
    %v125 = vld [vmem:[#allocation7 + $0xc] sm:$0xf]
    %v126 = vld [vmem:[#allocation7 + $0x10] sm:$0xf]
    %v127 = vld [vmem:[#allocation7 + $0x14] sm:$0xf]
    %v128 = vld [vmem:[#allocation7 + $0x18] sm:$0xf]
    %v129 = vld [vmem:[#allocation7 + $0x1c] sm:$0xf]
    %v130 = vld [vmem:[#allocation7 + $0x20] sm:$0xf]
    %v131 = vld [vmem:[#allocation7 + $0x24] sm:$0xf]
    %v132 = vld [vmem:[#allocation7 + $0x28] sm:$0xf]
    %v133 = vld [vmem:[#allocation7 + $0x2c] sm:$0xf]
    %v134 = vld [vmem:[#allocation7 + $0x30] sm:$0xf]
    %v135 = vld [vmem:[#allocation7 + $0x34] sm:$0xf]
    %v136 = vld [vmem:[#allocation7 + $0x38] sm:$0xf]
    %v137 = vld [vmem:[#allocation7 + $0x3c] sm:$0xf]
    %v138 = vld [vmem:[%s4] sm:$0x1]
    %v140 = vperm.slane %v138, 0
    %v158 = vunpack.c.l.b16 %v122
    %v159 = vunpack.c.l.b16 %v123
    %v160 = vunpack.c.l.b16 %v124
    %v161 = vunpack.c.l.b16 %v125
    %v162 = vunpack.c.l.b16 %v126
    %v163 = vunpack.c.l.b16 %v127
    %v164 = vunpack.c.l.b16 %v128
    %v165 = vunpack.c.l.b16 %v129
    %v166 = vunpack.c.l.b16 %v130
    %v167 = vunpack.c.l.b16 %v131
    %v168 = vunpack.c.l.b16 %v132
    %v169 = vunpack.c.l.b16 %v133
    %v170 = vunpack.c.l.b16 %v134
    %v171 = vunpack.c.l.b16 %v135
    %v172 = vunpack.c.l.b16 %v136
    %v173 = vunpack.c.l.b16 %v137
    %v174 = vpack.c.b16 %v159, %v158
    %v175 = vpack.c.b16 %v161, %v160
    %v176 = vpack.c.b16 %v163, %v162
    %v177 = vpack.c.b16 %v165, %v164
    %v178 = vpack.c.b16 %v167, %v166
    %v179 = vpack.c.b16 %v169, %v168
    %v180 = vpack.c.b16 %v171, %v170
    %v181 = vpack.c.b16 %v173, %v172
    %190 = vmatpush.bf16.msra.mxu0 %v181
    %191 = vmatpush.bf16.msra.mxu0 %v180
    %192 = vmatpush.bf16.msra.mxu0 %v179
    %193 = vmatpush.bf16.msra.mxu0 %v178
    %194 = vmatpush.bf16.msra.mxu0 %v177
    %195 = vmatpush.bf16.msra.mxu0 %v176
    %196 = vmatpush.bf16.msra.mxu0 %v175
    %197 = vmatpush.bf16.msra.mxu0 %v174
    %198 = vmatmul.bf16.gmra.mxu0 %v121
    %v199 = vpop.f32.mrf.mxu0
    %v200 = vadd.f32 %v140, %v199
    %v201 = vpop.f32.mrf.mxu0
    %202 = vdwg.mxu0
    %v203 = vtanh.pop %v200
    %v204 = vpack.c.bf16 %v203, %v203
    %v205 = vld [vmem:[#allocation8] sm:$0xf]
    %v206 = vld [vmem:[#allocation8 + $0x4] sm:$0xf]
    %v207 = vld [vmem:[#allocation8 + $0x8] sm:$0xf]
    %v208 = vld [vmem:[#allocation8 + $0xc] sm:$0xf]
    %v209 = vld [vmem:[#allocation8 + $0x10] sm:$0xf]
    %v210 = vld [vmem:[#allocation8 + $0x14] sm:$0xf]
    %v211 = vld [vmem:[#allocation8 + $0x18] sm:$0xf]
    %v212 = vld [vmem:[#allocation8 + $0x1c] sm:$0xf]
    %v213 = vld [vmem:[#allocation8 + $0x20] sm:$0xf]
    %v214 = vld [vmem:[#allocation8 + $0x24] sm:$0xf]
    %v215 = vld [vmem:[#allocation8 + $0x28] sm:$0xf]
    %v216 = vld [vmem:[#allocation8 + $0x2c] sm:$0xf]
    %v217 = vld [vmem:[#allocation8 + $0x30] sm:$0xf]
    %v218 = vld [vmem:[#allocation8 + $0x34] sm:$0xf]
    %v219 = vld [vmem:[#allocation8 + $0x38] sm:$0xf]
    %v220 = vld [vmem:[#allocation8 + $0x3c] sm:$0xf]
    %v221 = vld [vmem:[%s6] sm:$0x1]
    %v223 = vperm.slane %v221, 0
    %v241 = vunpack.c.l.b16 %v205
    %v242 = vunpack.c.l.b16 %v206
    %v243 = vunpack.c.l.b16 %v207
    %v244 = vunpack.c.l.b16 %v208
    %v245 = vunpack.c.l.b16 %v209
    %v246 = vunpack.c.l.b16 %v210
    %v247 = vunpack.c.l.b16 %v211
    %v248 = vunpack.c.l.b16 %v212
    %v249 = vunpack.c.l.b16 %v213
    %v250 = vunpack.c.l.b16 %v214
    %v251 = vunpack.c.l.b16 %v215
    %v252 = vunpack.c.l.b16 %v216
    %v253 = vunpack.c.l.b16 %v217
    %v254 = vunpack.c.l.b16 %v218
    %v255 = vunpack.c.l.b16 %v219
    %v256 = vunpack.c.l.b16 %v220
    %v257 = vpack.c.b16 %v242, %v241
    %v258 = vpack.c.b16 %v244, %v243
    %v259 = vpack.c.b16 %v246, %v245
    %v260 = vpack.c.b16 %v248, %v247
    %v261 = vpack.c.b16 %v250, %v249
    %v262 = vpack.c.b16 %v252, %v251
    %v263 = vpack.c.b16 %v254, %v253
    %v264 = vpack.c.b16 %v256, %v255
    %273 = vmatpush.bf16.msra.mxu0 %v264
    %274 = vmatpush.bf16.msra.mxu0 %v263
    %275 = vmatpush.bf16.msra.mxu0 %v262
    %276 = vmatpush.bf16.msra.mxu0 %v261
    %277 = vmatpush.bf16.msra.mxu0 %v260
    %278 = vmatpush.bf16.msra.mxu0 %v259
    %279 = vmatpush.bf16.msra.mxu0 %v258
    %280 = vmatpush.bf16.msra.mxu0 %v257
    %281 = vmatmul.bf16.gmra.mxu0 %v204
    %v282 = vpop.f32.mrf.mxu0
    %v283 = vadd.f32 %v223, %v282
    %v284 = vpop.f32.mrf.mxu0
    %285 = vdwg.mxu0
    %v286 = vpack.c.bf16 %v283, %v283
    %287 = vst [vmem:[#allocation10] sm:$0xf] %v286
    // Predicated region
    $region46: #{tpu_custom_call.1} parent=1 // pred_check
      _
    $region47: #{tpu_custom_call.1} parent=1 // pred_check_branch
      %289 = sbr.rel (0) target = $region49
    $region48: #{tpu_custom_call.1} parent=1 // pred_region
      %291 = vsyncadd [#allocation4], 0
      %s293 = sshll.u32 [#allocation10], 4
      %s294 = int_to_ptr.vmem [resolvable:$true] %s293
      %s295 = sshll.u32 %s7, 4
      %s296 = int_to_ptr.hbm [resolvable:$true] %s295
      %298 = dma.vmem_to_hbm [thread:$0]  %s294, 64, %s296, [#allocation4]
    $region49: #{tpu_custom_call.1} parent=1 // pred_fallthru
      _
    // Predicated region
    $region50: #{tpu_custom_call.1} parent=1 // pred_check
      _
    $region51: #{tpu_custom_call.1} parent=1 // pred_check_branch
      %300 = sbr.rel (0) target = $region53
    $region52: #{tpu_custom_call.1} parent=1 // pred_region
      %302 = dma.done [#allocation4], 64
    $region53: #{tpu_custom_call.1} parent=1 // pred_fallthru
      _
    %303 = vsyncpa [#allocation3], 1
    %304 = vsyncpa [#allocation6], 1
    %305 = vsyncpa [#allocation9], 1
    %306 = vsyncpa [#allocation4], 1

</llo_original>
